<compile_context>
chip_gen: v5e
topology: v5e:2x2
jax: 0.10.0
libtpu: 0.0.40
codegen_flags: <defaults>
</compile_context>

<pallas_src>
import jax
import jax.numpy as jnp
from jax.experimental import pallas as pl
from jax.experimental.pallas import tpu as pltpu


def _make_gate_fusion_kernel(num_encoders):
    """Builds the kernel for a fixed (static) number of encoders E."""

    def kernel(*refs):
        x_refs = refs[:num_encoders]            # E refs, each [tm, H]
        w_ref = refs[num_encoders]              # [H, E]   gating projection weight (transposed)
        b_ref = refs[num_encoders + 1]          # [1, E]   gating projection bias
        out_ref = refs[num_encoders + 2]        # [tm, H]  mixed_encoder_out tile

        h0 = x_refs[0][...].astype(jnp.float32)                              # [tm, H]

        # gating_weights_projection(final_encoder_outputs[0]) -> logits [tm, E].
        # E (~3) pads to 128 MXU lanes but this matmul is pure filler under the HBM roofline.
        logits = jnp.dot(h0, w_ref[...].astype(jnp.float32),
                         preferred_element_type=jnp.float32)
        logits = logits + b_ref[...].astype(jnp.float32)                     # [tm, E]

        # softmax over the encoder axis, with the 1/E mean folded into the normalizer
        # (reciprocal goes to the EUP slot -> effectively free).
        m = jnp.max(logits, axis=-1, keepdims=True)                          # [tm, 1]
        ex = jnp.exp(logits - m)                                             # [tm, E]
        denom = jnp.sum(ex, axis=-1, keepdims=True)                          # [tm, 1]
        inv = pl.reciprocal(jnp.float32(num_encoders) * denom, approx=True)  # [tm, 1]

        # Extract the E gate columns once (each [tm, 1]), then accumulate in f32.
        gates = [ex[:, e:e + 1] * inv for e in range(num_encoders)]

        acc = gates[0] * h0
        for e in range(1, num_encoders):                                     # E small & static
            acc = acc + gates[e] * x_refs[e][...].astype(jnp.float32)
        out_ref[...] = acc.astype(out_ref.dtype)

    return kernel


def gate_fusion(encoder_hiddens, gate_w, gate_b, *, tm=512, vmem_limit_bytes=None):
    """Gate fusion over E encoder hidden states.

    encoder_hiddens : list of E arrays [M, H] (index 0 = pretrained encoder hidden)
    gate_w          : [H, E]  (transpose of the torch Linear weight)
    gate_b          : [E]
    returns         : [M, H] mixed hidden states (dtype follows encoder_hiddens[0])
    """
    num_encoders = len(encoder_hiddens)
    M, H = encoder_hiddens[0].shape
    out_dtype = encoder_hiddens[0].dtype

    # Tile rows: big tiles amortize the ~0.35 us per-grid-step overhead. Clamp to M; if the
    # tile is not the full row extent it must be a multiple of 8 (sublane rule). Partial last
    # blocks are handled by Pallas (padded reads / masked writes), so M need not divide evenly.
    tm = min(tm, M)
    if tm != M:
        tm = max(8, (tm // 8) * 8)
    grid = (pl.cdiv(M, tm),)

    b2d = gate_b.reshape(1, num_encoders)

    in_specs = [pl.BlockSpec((tm, H), lambda i: (i, 0)) for _ in range(num_encoders)]
    in_specs += [
        pl.BlockSpec((H, num_encoders), lambda i: (0, 0)),   # resident weight
        pl.BlockSpec((1, num_encoders), lambda i: (0, 0)),   # resident bias
    ]

    if vmem_limit_bytes is None:
        itemsize = jnp.dtype(out_dtype).itemsize
        # double-buffered E input blocks + output block, plus resident W/b, with headroom.
        need = 2 * (num_encoders + 1) * tm * H * itemsize + (H + 1) * num_encoders * 4
        vmem_limit_bytes = int(min(96 * 2**20, max(32 * 2**20, 2 * need)))

    return pl.pallas_call(
        _make_gate_fusion_kernel(num_encoders),
        out_shape=jax.ShapeDtypeStruct((M, H), out_dtype),
        grid_spec=pltpu.PrefetchScalarGridSpec(
            num_scalar_prefetch=0,
            grid=grid,
            in_specs=in_specs,
            out_specs=pl.BlockSpec((tm, H), lambda i: (i, 0)),
        ),
        compiler_params=pltpu.CompilerParams(
            dimension_semantics=("parallel",),       # let v7x's 2 TCs split the row axis
            vmem_limit_bytes=vmem_limit_bytes),
    )(*encoder_hiddens, gate_w, b2d)


def multi_domain_adapter_encoder_forward(final_encoder_outputs, gate_w, gate_b,
                                         no_encoder_integration=False, *, tm=512):
    """Glue mirroring MultiDomainAdapterEncoder.forward for adapter_combo_method='gate'.

    final_encoder_outputs: list of [B, S, H] arrays, index 0 = pretrained encoder hidden.
    Returns (all_encoder_outputs, final_encoder_outputs) analogous to the torch module,
    with all_encoder_outputs standing in for the (externally produced) encoder output tuples.
    """
    B, S, H = final_encoder_outputs[0].shape
    # Reshapes are views (no HBM copy); each encoder output is a separate kernel input.
    flat = [h.reshape(B * S, H) for h in final_encoder_outputs]
    mixed = gate_fusion(flat, gate_w, gate_b, tm=tm).reshape(B, S, H)

    all_encoder_outputs = tuple(final_encoder_outputs)  # placeholders for full encoder tuples
    outs = list(final_encoder_outputs)
    if not no_encoder_integration:
        outs[0] = mixed
    return all_encoder_outputs, outs


def _reference(final_encoder_outputs, gate_w, gate_b):
    """Pure-JAX reference of the torch 'gate' branch (exact softmax / mean)."""
    h0 = final_encoder_outputs[0].astype(jnp.float32)              # [B, S, H]
    logits = h0 @ gate_w + gate_b                                  # [B, S, E]
    weights = jax.nn.softmax(logits, axis=-1)[..., None, :]        # [B, S, 1, E]
    stacked = jnp.stack([h.astype(jnp.float32) for h in final_encoder_outputs], axis=-1)
    return jnp.mean(weights * stacked, axis=-1)                    # [B, S, H]


if __name__ == "__main__":
    # Small shapes consistent with the module: batch=2, seq=8, hidden=32,
    # active_domains=2 -> E = 2 + 1 = 3 encoders (pretrained + two adapters).
    B, S, H = 2, 8, 32
    E = 3

    key = jax.random.PRNGKey(0)
    keys = jax.random.split(key, E + 2)

    final_encoder_outputs = [
        jax.random.normal(keys[i], (B, S, H), dtype=jnp.float32) for i in range(E)
    ]
    # gating_weights_projection: nn.Linear(hidden_size, len(active_domains)+1)
    # torch weight shape [E, H]; we store its transpose [H, E].
    gate_w = 0.1 * jax.random.normal(keys[E], (H, E), dtype=jnp.float32)
    gate_b = 0.1 * jax.random.normal(keys[E + 1], (E,), dtype=jnp.float32)

    all_outs, final_outs = multi_domain_adapter_encoder_forward(
        final_encoder_outputs, gate_w, gate_b)
    mixed = jax.block_until_ready(final_outs[0])
    ref = _reference(final_encoder_outputs, gate_w, gate_b)
    assert mixed.shape == (B, S, H)
    # approx=True reciprocal (EUP vrcp) has ~2^-12 relative error on the gate -> loose tol.
    assert jnp.allclose(mixed, ref, atol=2e-3, rtol=2e-3), "mismatch vs reference (f32)"

    # Multi-tile path: M = 4*512 rows -> 4 grid steps at the default tm=512.
    B2, S2 = 4, 512
    keys2 = jax.random.split(jax.random.PRNGKey(1), E)
    outs2 = [jax.random.normal(keys2[i], (B2, S2, H), dtype=jnp.float32) for i in range(E)]
    _, f2 = multi_domain_adapter_encoder_forward(outs2, gate_w, gate_b)
    mixed2 = jax.block_until_ready(f2[0])
    ref2 = _reference(outs2, gate_w, gate_b)
    assert jnp.allclose(mixed2, ref2, atol=2e-3, rtol=2e-3), "mismatch vs reference (tiled)"

    # bf16 I/O path (halves HBM bytes moved); compute stays f32 inside the kernel.
    outs_bf16 = [h.astype(jnp.bfloat16) for h in final_encoder_outputs]
    _, f3 = multi_domain_adapter_encoder_forward(outs_bf16, gate_w, gate_b)
    mixed_bf16 = jax.block_until_ready(f3[0])
    assert mixed_bf16.dtype == jnp.bfloat16
    assert jnp.allclose(mixed_bf16.astype(jnp.float32), ref, atol=1e-1, rtol=1e-1), \
        "mismatch vs reference (bf16 I/O)"

    print("KERNEL_OK")
</pallas_src>

<mosaic_0001>
module attributes {stable_mosaic.version = 11 : i64} {
  func.func @kernel(%arg0: i32, %arg1: memref<16x32xf32, #tpu.memory_space<vmem>>, %arg2: memref<16x32xf32, #tpu.memory_space<vmem>>, %arg3: memref<16x32xf32, #tpu.memory_space<vmem>>, %arg4: memref<32x3xf32, #tpu.memory_space<vmem>>, %arg5: memref<1x3xf32, #tpu.memory_space<vmem>>, %arg6: memref<16x32xf32, #tpu.memory_space<vmem>>) attributes {dimension_semantics = [#tpu.dimension_semantics<parallel>], iteration_bounds = array<i64: 1>, scalar_prefetch = 0 : i64, scratch_operands = 0 : i64, tpu.core_type = #tpu.core_type<tc>, window_params = [{transform_indices = @transform_0, window_bounds = array<i64: 16, 32>}, {transform_indices = @transform_1, window_bounds = array<i64: 16, 32>}, {transform_indices = @transform_2, window_bounds = array<i64: 16, 32>}, {pipeline_mode = #tpu.pipeline_mode<synchronous>, transform_indices = @transform_3, window_bounds = array<i64: 32, 3>}, {pipeline_mode = #tpu.pipeline_mode<synchronous>, transform_indices = @transform_4, window_bounds = array<i64: 1, 3>}, {transform_indices = @transform_5, window_bounds = array<i64: 16, 32>}]} {
    %c0 = arith.constant 0 : index
    %c0_0 = arith.constant 0 : index
    %0 = vector.load %arg1[%c0, %c0_0] : memref<16x32xf32, #tpu.memory_space<vmem>>, vector<16x32xf32>
    %c0_1 = arith.constant 0 : index
    %c0_2 = arith.constant 0 : index
    %1 = vector.load %arg4[%c0_1, %c0_2] : memref<32x3xf32, #tpu.memory_space<vmem>>, vector<32x3xf32>
    %cst = arith.constant dense<0.000000e+00> : vector<16x3xf32>
    %2 = tpu.matmul %0, %1, %cst {dimension_numbers = #tpu.dot_dimension_numbers<[1], [0], [0], [1], [0, 0, 1, 1], [], []>} : vector<16x32xf32>, vector<32x3xf32>, vector<16x3xf32> -> vector<16x3xf32>
    %c0_3 = arith.constant 0 : index
    %c0_4 = arith.constant 0 : index
    %3 = vector.load %arg5[%c0_3, %c0_4] : memref<1x3xf32, #tpu.memory_space<vmem>>, vector<1x3xf32>
    %4 = vector.broadcast %3 : vector<1x3xf32> to vector<16x3xf32>
    %5 = arith.addf %2, %4 : vector<16x3xf32>
    %cst_5 = arith.constant dense<0xFF800000> : vector<16xf32>
    %6 = vector.multi_reduction <maximumf>, %5, %cst_5 [1] : vector<16x3xf32> to vector<16xf32>
    %7 = vector.shape_cast %6 : vector<16xf32> to vector<16x1xf32>
    %8 = vector.broadcast %7 : vector<16x1xf32> to vector<16x3xf32>
    %9 = arith.subf %5, %8 : vector<16x3xf32>
    %10 = math.exp %9 : vector<16x3xf32>
    %cst_6 = arith.constant dense<0.000000e+00> : vector<16xf32>
    %11 = vector.multi_reduction <add>, %10, %cst_6 [1] : vector<16x3xf32> to vector<16xf32>
    %12 = vector.shape_cast %11 : vector<16xf32> to vector<16x1xf32>
    %cst_7 = arith.constant 3.000000e+00 : f32
    %13 = vector.broadcast %cst_7 : f32 to vector<16x1xf32>
    %14 = arith.mulf %13, %12 : vector<16x1xf32>
    %15 = tpu.reciprocal %14 {approx = true} : vector<16x1xf32> -> vector<16x1xf32>
    %16 = vector.extract_strided_slice %10 {offsets = [0, 0], sizes = [16, 1], strides = [1, 1]} : vector<16x3xf32> to vector<16x1xf32>
    %17 = arith.mulf %16, %15 : vector<16x1xf32>
    %18 = vector.extract_strided_slice %10 {offsets = [0, 1], sizes = [16, 1], strides = [1, 1]} : vector<16x3xf32> to vector<16x1xf32>
    %19 = arith.mulf %18, %15 : vector<16x1xf32>
    %20 = vector.extract_strided_slice %10 {offsets = [0, 2], sizes = [16, 1], strides = [1, 1]} : vector<16x3xf32> to vector<16x1xf32>
    %21 = arith.mulf %20, %15 : vector<16x1xf32>
    %22 = vector.broadcast %17 : vector<16x1xf32> to vector<16x32xf32>
    %23 = arith.mulf %22, %0 : vector<16x32xf32>
    %c0_8 = arith.constant 0 : index
    %c0_9 = arith.constant 0 : index
    %24 = vector.load %arg2[%c0_8, %c0_9] : memref<16x32xf32, #tpu.memory_space<vmem>>, vector<16x32xf32>
    %25 = vector.broadcast %19 : vector<16x1xf32> to vector<16x32xf32>
    %26 = arith.mulf %25, %24 : vector<16x32xf32>
    %27 = arith.addf %23, %26 : vector<16x32xf32>
    %c0_10 = arith.constant 0 : index
    %c0_11 = arith.constant 0 : index
    %28 = vector.load %arg3[%c0_10, %c0_11] : memref<16x32xf32, #tpu.memory_space<vmem>>, vector<16x32xf32>
    %29 = vector.broadcast %21 : vector<16x1xf32> to vector<16x32xf32>
    %30 = arith.mulf %29, %28 : vector<16x32xf32>
    %31 = arith.addf %27, %30 : vector<16x32xf32>
    %c0_12 = arith.constant 0 : index
    %c0_13 = arith.constant 0 : index
    %32 = vector.load %arg6[%c0_12, %c0_13] : memref<16x32xf32, #tpu.memory_space<vmem>>, vector<16x32xf32>
    tpu.vector_store %arg6[%c0_12, %c0_13], %31 {strides = array<i32>} : memref<16x32xf32, #tpu.memory_space<vmem>>, vector<16x32xf32>,
    return
  }
  func.func @transform_0(%arg0: i32) -> (i32, i32) {
    %c0_i32 = arith.constant 0 : i32
    %c0_i32_0 = arith.constant 0 : i32
    return %arg0, %c0_i32 : i32, i32
  }
  func.func @transform_1(%arg0: i32) -> (i32, i32) {
    %c0_i32 = arith.constant 0 : i32
    %c0_i32_0 = arith.constant 0 : i32
    return %arg0, %c0_i32 : i32, i32
  }
  func.func @transform_2(%arg0: i32) -> (i32, i32) {
    %c0_i32 = arith.constant 0 : i32
    %c0_i32_0 = arith.constant 0 : i32
    return %arg0, %c0_i32 : i32, i32
  }
  func.func @transform_3(%arg0: i32) -> (i32, i32) {
    %c0_i32 = arith.constant 0 : i32
    %c0_i32_0 = arith.constant 0 : i32
    %c0_i32_1 = arith.constant 0 : i32
    return %c0_i32, %c0_i32_0 : i32, i32
  }
  func.func @transform_4(%arg0: i32) -> (i32, i32) {
    %c0_i32 = arith.constant 0 : i32
    %c0_i32_0 = arith.constant 0 : i32
    %c0_i32_1 = arith.constant 0 : i32
    return %c0_i32, %c0_i32_0 : i32, i32
  }
  func.func @transform_5(%arg0: i32) -> (i32, i32) {
    %c0_i32 = arith.constant 0 : i32
    %c0_i32_0 = arith.constant 0 : i32
    return %arg0, %c0_i32 : i32, i32
  }
}

</mosaic_0001>

<llo_original>
// kernel: tpu_custom_call.1
$region0: #{tpu_custom_call.1}
  #allocation0 [shape = 'u32[]', space=smem, size = 0x4, offset = 0x4, fixed_abs, tag = 'smem constant byte address 0x4 - core index']
  #allocation1 [shape = 'u32[72,128]{1,0:T(1,128)}', space=vmem, size = 0x9000, scoped, tag = 'internal scratch']
  %s0 = inlined_call_operand.vmem [shape: f32[16,32], index: 0, kind: input, shape index: {}]
  %s1 = inlined_call_operand.vmem [shape: f32[16,32], index: 1, kind: input, shape index: {}]
  %s2 = inlined_call_operand.hbm [shape: f32[16,32], index: 2, kind: input, shape index: {}]
  %s3 = inlined_call_operand.vmem [shape: f32[32,3], index: 3, kind: input, shape index: {}]
  %s4 = inlined_call_operand.vmem [shape: f32[1,3], index: 4, kind: input, shape index: {}]
  %s5 = inlined_call_operand.hbm [shape: f32[16,32], index: 5, kind: output, shape index: {}]
  %s6 = sld [smem:[#allocation0]]
  $region34: #{tpu_custom_call.1} parent=0
    _
  %s8 = ssub.s32 1, %s6
  %s9 = scalar_select 0, %s8, %s6
  $region1: #{tpu_custom_call.1} parent=0
    #allocation2 [shape = 'u8[8192]{0}', space=vmem, size = 0x2000, scoped, tag = 'input window, operand 2, single buffered']
    #allocation3 [shape = 's32[1]{0}', space=sflag, size = 0x4, scoped, tag = 'scoped memory for tpu_custom_call.1']
    #allocation4 [shape = 's32[1]{0}', space=sflag, size = 0x4, scoped, tag = 'scoped memory for tpu_custom_call.1']
    #allocation5 [shape = 'u8[8192]{0}', space=vmem, size = 0x2000, scoped, tag = 'output window, operand 0, single buffered']
    %10 = vsyncpa [#allocation3], 0
    %11 = vsyncpa [#allocation4], 0
    // Predicated region
    $region2: #{tpu_custom_call.1} parent=1 // pred_check
      _
    $region3: #{tpu_custom_call.1} parent=1 // pred_check_branch
      %13 = sbr.rel (0) target = $region5
    $region4: #{tpu_custom_call.1} parent=1 // pred_region
      _
    $region5: #{tpu_custom_call.1} parent=1 // pred_fallthru
      _
    // Predicated region
    $region6: #{tpu_custom_call.1} parent=1 // pred_check
      _
    $region7: #{tpu_custom_call.1} parent=1 // pred_check_branch
      %15 = sbr.rel (0) target = $region9
    $region8: #{tpu_custom_call.1} parent=1 // pred_region
      _
    $region9: #{tpu_custom_call.1} parent=1 // pred_fallthru
      _
    // Predicated region
    $region10: #{tpu_custom_call.1} parent=1 // pred_check
      _
    $region11: #{tpu_custom_call.1} parent=1 // pred_check_branch
      %17 = sbr.rel (0) target = $region13
    $region12: #{tpu_custom_call.1} parent=1 // pred_region
      %19 = vsyncadd [#allocation3], 0
      %s20 = sshll.u32 %s2, 4
      %s21 = int_to_ptr.hbm [resolvable:$true] %s20
      %s22 = sshll.u32 [#allocation2], 4
      %s23 = int_to_ptr.vmem [resolvable:$true] %s22
      %28 = dma.hbm_to_vmem [thread:$0]  %s21, 256, %s23, [#allocation3], 128, 128, 8
    $region13: #{tpu_custom_call.1} parent=1 // pred_fallthru
      _
    // Predicated region
    $region14: #{tpu_custom_call.1} parent=1 // pred_check
      _
    $region15: #{tpu_custom_call.1} parent=1 // pred_check_branch
      %30 = sbr.rel (0) target = $region17
    $region16: #{tpu_custom_call.1} parent=1 // pred_region
      _
    $region17: #{tpu_custom_call.1} parent=1 // pred_fallthru
      _
    // Predicated region
    $region18: #{tpu_custom_call.1} parent=1 // pred_check
      _
    $region19: #{tpu_custom_call.1} parent=1 // pred_check_branch
      %32 = sbr.rel (0) target = $region21
    $region20: #{tpu_custom_call.1} parent=1 // pred_region
      _
    $region21: #{tpu_custom_call.1} parent=1 // pred_fallthru
      _
    // Predicated region
    $region22: #{tpu_custom_call.1} parent=1 // pred_check
      _
    $region23: #{tpu_custom_call.1} parent=1 // pred_check_branch
      %34 = sbr.rel (0) target = $region25
    $region24: #{tpu_custom_call.1} parent=1 // pred_region
      %36 = dma.done [#allocation3], 256
    $region25: #{tpu_custom_call.1} parent=1 // pred_fallthru
      _
    %v37 = vld [vmem:[%s0] sm:$0xff]
    %v38 = vld [vmem:[%s0 + $0x8] sm:$0xff]
    %v39 = vld [vmem:[%s3] sm:$0xff]
    %v40 = vld [vmem:[%s3 + $0x8] sm:$0xff]
    %v41 = vld [vmem:[%s3 + $0x10] sm:$0xff]
    %v42 = vld [vmem:[%s3 + $0x18] sm:$0xff]
    %v43 = vld [vmem:[%s4] sm:$0x1]
    %v45 = vperm.slane %v43, 0
    %vm47 = vcmask 261120
    %v49 = vsel %vm47, %v37, 0
    %v52 = vsel %vm47, %v38, 0
    %54 = vmatpush.msra.mxu0 0.0
    %55 = vmatpush.msra.mxu0 0.0
    %56 = vmatpush.msra.mxu0 0.0
    %57 = vmatpush.msra.mxu0 0.0
    %58 = vmatpush.msra.mxu0 0.0
    %59 = vmatpush.msra.mxu0 0.0
    %60 = vmatpush.msra.mxu0 0.0
    %61 = vmatpush.msra.mxu0 0.0
    %62 = vmatpush.msra.mxu0 0.0
    %63 = vmatpush.msra.mxu0 0.0
    %64 = vmatpush.msra.mxu0 0.0
    %65 = vmatpush.msra.mxu0 0.0
    %66 = vmatpush.msra.mxu0 %v42
    %67 = vmatpush.msra.mxu0 %v41
    %68 = vmatpush.msra.mxu0 %v40
    %69 = vmatpush.msra.mxu0 %v39
    %70 = vmatmul.f32.gmra.mxu0 %v49
    %v71 = vpop.f32.mrf.mxu0
    %v72 = vadd.f32 %v45, %v71
    %73 = vmatmul.f32.gmra.mxu0 %v52
    %v74 = vpop.f32.mrf.mxu0
    %v75 = vadd.f32 %v45, %v74
    %76 = vdwg.mxu0
    %vm77 = vcmask 23552
    %v78 = vsel %vm77, %v72, -inf
    %79 = vmax.xlane.f32.xlu0 %v78
    %v80 = vpop.xlane.xlu0 %79
    %v81 = vsel %vm77, %v75, -inf
    %82 = vmax.xlane.f32.xlu0 %v81
    %v83 = vpop.xlane.xlu0 %82
    %v84 = vsub.f32 %v72, %v80
    %v85 = vsub.f32 %v75, %v83
    %v86 = vmul.f32 %v84, 1.442695
    %v87 = vpow.pop %v86
    %v88 = vmul.f32 %v85, 1.442695
    %v89 = vpow.pop %v88
    %v90 = vsel %vm77, %v87, 0.0
    %91 = vadd.xlane.f32.xlu0 %v90
    %v92 = vpop.xlane.xlu0 %91
    %v93 = vsel %vm77, %v89, 0.0
    %94 = vadd.xlane.f32.xlu0 %v93
    %v95 = vpop.xlane.xlu0 %94
    %v96 = vmul.f32 %v92, 3.0
    %v97 = vmul.f32 %v95, 3.0
    %v98 = vrcp.pop %v96
    %v99 = vrcp.pop %v97
    %v100 = vmul.f32 %v87, %v98
    %v101 = vmul.f32 %v89, %v99
    %103 = vset.pattern.permute.xlu0 0
    %104 = vperm.xlu0 %103, %v100
    %v105 = vpop.permute.xlu0 %104
    %108 = vset.pattern.permute.xlu0 0
    %109 = vperm.xlu0 %108, %v101
    %v110 = vpop.permute.xlu0 %109
    %v112 = vmul.f32 %v105, %v37
    %v113 = vmul.f32 %v110, %v38
    %v114 = vld [vmem:[%s1] sm:$0xff]
    %v115 = vld [vmem:[%s1 + $0x8] sm:$0xff]
    %116 = vset.pattern.permute.xlu0 1
    %117 = vperm.xlu0 %116, %v100
    %v118 = vpop.permute.xlu0 %117
    %120 = vset.pattern.permute.xlu0 1
    %121 = vperm.xlu0 %120, %v101
    %v122 = vpop.permute.xlu0 %121
    %v124 = vmul.f32 %v118, %v114
    %v125 = vmul.f32 %v122, %v115
    %v126 = vadd.f32 %v112, %v124
    %v127 = vadd.f32 %v113, %v125
    %v128 = vld [vmem:[#allocation2] sm:$0xff]
    %v129 = vld [vmem:[#allocation2 + $0x8] sm:$0xff]
    %130 = vset.pattern.permute.xlu0 2
    %131 = vperm.xlu0 %130, %v100
    %v132 = vpop.permute.xlu0 %131
    %134 = vset.pattern.permute.xlu0 2
    %135 = vperm.xlu0 %134, %v101
    %v136 = vpop.permute.xlu0 %135
    %v138 = vmul.f32 %v132, %v128
    %v139 = vmul.f32 %v136, %v129
    %v140 = vadd.f32 %v126, %v138
    %v141 = vadd.f32 %v127, %v139
    %142 = vst.msk [vmem:[#allocation5] sm:$0xff] %vm47, %v140
    %143 = vst.msk [vmem:[#allocation5 + $0x8] sm:$0xff] %vm47, %v141
    // Predicated region
    $region26: #{tpu_custom_call.1} parent=1 // pred_check
      _
    $region27: #{tpu_custom_call.1} parent=1 // pred_check_branch
      %145 = sbr.rel (0) target = $region29
    $region28: #{tpu_custom_call.1} parent=1 // pred_region
      %147 = vsyncadd [#allocation4], 0
      %s148 = sshll.u32 [#allocation5], 4
      %s149 = int_to_ptr.vmem [resolvable:$true] %s148
      %s150 = sshll.u32 %s5, 4
      %s151 = int_to_ptr.hbm [resolvable:$true] %s150
      %156 = dma.vmem_to_hbm [thread:$0]  %s149, 256, %s151, [#allocation4], 128, 128, 8
    $region29: #{tpu_custom_call.1} parent=1 // pred_fallthru
      _
    // Predicated region
    $region30: #{tpu_custom_call.1} parent=1 // pred_check
      _
    $region31: #{tpu_custom_call.1} parent=1 // pred_check_branch
      %158 = sbr.rel (0) target = $region33
    $region32: #{tpu_custom_call.1} parent=1 // pred_region
      %160 = dma.done [#allocation4], 256
    $region33: #{tpu_custom_call.1} parent=1 // pred_fallthru
      _
    %161 = vsyncpa [#allocation3], 1
    %162 = vsyncpa [#allocation4], 1

</llo_original>
